<compile_context>
chip_gen: v5e
topology: v5e:2x2
jax: 0.10.0
libtpu: 0.0.40
codegen_flags: <defaults>
</compile_context>

<pallas_src>
import jax
import jax.numpy as jnp
from jax import lax
from jax.experimental import pallas as pl
from jax.experimental.pallas import tpu as pltpu

EPS = 1e-5
F_PAD = 128  # lane-dense feature padding


def dense_kernel(x_ref, w_ref, bn_ref, o_ref):
    """x_ref: (N, 128) bf16; w_ref: (3, 128, 128) bf16; bn_ref: (2, 3, 1, 128) f32;
    o_ref: (N, 128) bf16."""
    n = x_ref.shape[0]
    inv_n = 1.0 / n
    # One (1, N) ones row, hoisted once: batch-axis sums ride the (mostly idle)
    # MXU instead of the XLU (axis=0 is the sublane axis -> XLU reduction).
    ones_row = jnp.ones((1, n), jnp.float32)

    def fused_layer(h_bf16, l):
        # Linear (bias omitted: exactly cancelled by training-mode BN mean).
        z = jnp.dot(h_bf16, w_ref[l], preferred_element_type=jnp.float32)   # MXU, f32 acc
        # BatchNorm1d training mode, all stats in f32 (v5e-safe).
        s = jnp.dot(ones_row, z, preferred_element_type=jnp.float32)        # (1,128) sum(z)
        ss = jnp.dot(ones_row, z * z, preferred_element_type=jnp.float32)   # (1,128) sum(z^2)
        mu = s * inv_n
        var = jnp.maximum(ss * inv_n - mu * mu, 0.0)   # E[z^2]-mu^2; clamp cancellation
        scale = bn_ref[0, l] * lax.rsqrt(var + EPS)    # (1,128); rsqrt -> EUP slot
        shift = bn_ref[1, l] - mu * scale
        zn = z * scale + shift
        # ReLU + bf16 inter-layer activation (next matmul wants bf16 anyway).
        return jnp.maximum(zn, 0.0).astype(jnp.bfloat16)

    h = fused_layer(x_ref[...], 0)
    h = fused_layer(h, 1)
    h = fused_layer(h, 2)
    o_ref[...] = h  # lane-dense, unmasked bf16 store


def dense_forward(x, w_slab, bn_slab, out_features):
    """x: (N, in_features) f32. Returns (N, out_features) f32."""
    n, fin = x.shape
    # Fused pad + bf16 cast: halves input HBM->VMEM bytes vs. the f32 pad.
    x_p = jnp.zeros((n, F_PAD), jnp.bfloat16).at[:, :fin].set(x.astype(jnp.bfloat16))

    # Resident-set estimate: bf16 in/out blocks + a handful of live f32 (N,128)
    # temporaries per layer, plus the weight / BN slabs. Capped at v7x's 64 MiB
    # physical VMEM; floor at the 16 MiB v5e default.
    est = n * F_PAD * (2 + 2 + 4 * 6) + w_slab.size * 2 + bn_slab.size * 4 + (2 << 20)
    vmem_limit = int(min(64 << 20, max(16 << 20, est)))
    # TODO(synk): for N beyond the whole-batch VMEM ceiling (~30k rows on v7x,
    # ~60k on v5e/v6e) switch to a batch-tiled grid with a two-pass BN
    # (sum/sum-sq scratch accumulation, then normalize) — that also enables
    # DMA pipelining and v7x dual-TC via dimension_semantics=("parallel",).

    y = pl.pallas_call(
        dense_kernel,
        out_shape=jax.ShapeDtypeStruct((n, F_PAD), jnp.bfloat16),
        in_specs=[
            pl.BlockSpec((n, F_PAD), lambda: (0, 0)),
            pl.BlockSpec(w_slab.shape, lambda: (0, 0, 0)),
            pl.BlockSpec(bn_slab.shape, lambda: (0, 0, 0, 0)),
        ],
        out_specs=pl.BlockSpec((n, F_PAD), lambda: (0, 0)),
        compiler_params=pltpu.CompilerParams(vmem_limit_bytes=vmem_limit),
        # No grid: single block, whole batch => exact BN statistics.
    )(x_p, w_slab, bn_slab)
    return y[:, :out_features].astype(jnp.float32)


def init_raw_params(key, in_c1, out_c1, out_c2, out_c3):
    """Synthetic per-layer params, PyTorch-style init. Weights stored (in, out)."""
    dims = [(in_c1, out_c1), (out_c1, out_c2), (out_c2, out_c3)]
    raw = []
    for (fin, fout) in dims:
        key, kw, kb = jax.random.split(key, 3)
        bound = float(fin) ** -0.5
        w = jax.random.uniform(kw, (fin, fout), jnp.float32, -bound, bound)
        # Bias kept only for the reference; the kernel drops it (BN cancels it).
        b = jax.random.uniform(kb, (1, fout), jnp.float32, -bound, bound)
        gamma = jnp.ones((fout,), jnp.float32)   # BatchNorm weight init
        beta = jnp.zeros((fout,), jnp.float32)   # BatchNorm bias init
        raw.append((w, b, gamma, beta))
    return raw


def pack_params(raw, f_pad=F_PAD):
    """Pack 3 layers into one bf16 weight slab + one f32 gamma/beta slab."""
    n_layers = len(raw)
    w_slab = jnp.zeros((n_layers, f_pad, f_pad), jnp.float32)
    gamma_slab = jnp.ones((n_layers, 1, f_pad), jnp.float32)   # pad gamma with 1
    beta_slab = jnp.zeros((n_layers, 1, f_pad), jnp.float32)   # pad beta with 0
    for l, (w, _b, g, be) in enumerate(raw):
        fin, fout = w.shape
        w_slab = w_slab.at[l, :fin, :fout].set(w)
        gamma_slab = gamma_slab.at[l, 0, :fout].set(g)
        beta_slab = beta_slab.at[l, 0, :fout].set(be)
    bn_slab = jnp.stack([gamma_slab, beta_slab], axis=0)       # (2, L, 1, f_pad)
    return w_slab.astype(jnp.bfloat16), bn_slab


def reference(x, raw):
    """Pure-JAX reference of the module's math (keeps the Linear bias; uses the
    same bf16 matmul operands / f32 BN accumulation as the kernel)."""
    h = x
    for (w, b, g, beta) in raw:
        z = jnp.dot(h.astype(jnp.bfloat16), w.astype(jnp.bfloat16),
                    preferred_element_type=jnp.float32) + b
        mu = z.mean(0, keepdims=True)
        var = ((z - mu) ** 2).mean(0, keepdims=True)
        h = jnp.maximum((z - mu) * lax.rsqrt(var + EPS) * g + beta, 0.0)
    return h


if __name__ == "__main__":
    # Small shapes consistent with the module: Dense(32, 64, 32, 16), batch=8.
    N, IN1, OUT1, OUT2, OUT3 = 8, 32, 64, 32, 16

    key = jax.random.PRNGKey(0)
    kx, kp, kx2 = jax.random.split(key, 3)
    x = jax.random.normal(kx, (N, IN1), jnp.float32)
    raw = init_raw_params(kp, IN1, OUT1, OUT2, OUT3)
    w_slab, bn_slab = pack_params(raw)

    y = dense_forward(x, w_slab, bn_slab, OUT3)
    y = jax.block_until_ready(y)
    assert y.shape == (N, OUT3)

    # Tolerance covers bf16 matmul operands / inter-layer & output bf16 rounding
    # (BN stats stay f32; variance formula E[z^2]-mu^2 vs. direct differs in ulps).
    y_ref = reference(x, raw)
    assert jnp.allclose(y, y_ref, atol=2e-2, rtol=2e-2), float(jnp.max(jnp.abs(y - y_ref)))

    # Also exercise an MXU-friendly batch (whole batch still one block; BN exact).
    x_big = jax.random.normal(kx2, (256, IN1), jnp.float32)
    y_big = jax.block_until_ready(dense_forward(x_big, w_slab, bn_slab, OUT3))
    y_big_ref = reference(x_big, raw)
    assert y_big.shape == (256, OUT3)
    assert jnp.allclose(y_big, y_big_ref, atol=2e-2, rtol=2e-2), \
        float(jnp.max(jnp.abs(y_big - y_big_ref)))

    print("KERNEL_OK")
</pallas_src>

<mosaic_0001>
module attributes {stable_mosaic.version = 11 : i64} {
  func.func @dense_kernel(%arg0: memref<8x128xbf16, #tpu.memory_space<vmem>>, %arg1: memref<3x128x128xbf16, #tpu.memory_space<vmem>>, %arg2: memref<2x3x1x128xf32, #tpu.memory_space<vmem>>, %arg3: memref<8x128xbf16, #tpu.memory_space<vmem>>) attributes {dimension_semantics = [], scalar_prefetch = 0 : i64, scratch_operands = 0 : i64, tpu.core_type = #tpu.core_type<tc>} {
    %cst = arith.constant 1.000000e+00 : f32
    %0 = vector.broadcast %cst : f32 to vector<1x8xf32>
    %c0 = arith.constant 0 : index
    %c0_0 = arith.constant 0 : index
    %1 = vector.load %arg0[%c0, %c0_0] : memref<8x128xbf16, #tpu.memory_space<vmem>>, vector<8x128xbf16>
    %c0_1 = arith.constant 0 : index
    %c0_2 = arith.constant 0 : index
    %c0_3 = arith.constant 0 : index
    %2 = vector.load %arg1[%c0_1, %c0_2, %c0_3] : memref<3x128x128xbf16, #tpu.memory_space<vmem>>, vector<1x128x128xbf16>
    %3 = vector.shape_cast %2 : vector<1x128x128xbf16> to vector<128x128xbf16>
    %cst_4 = arith.constant dense<0.000000e+00> : vector<8x128xf32>
    %4 = tpu.matmul %1, %3, %cst_4 {dimension_numbers = #tpu.dot_dimension_numbers<[1], [0], [0], [1], [0, 0, 1, 1], [], []>} : vector<8x128xbf16>, vector<128x128xbf16>, vector<8x128xf32> -> vector<8x128xf32>
    %cst_5 = arith.constant dense<0.000000e+00> : vector<1x128xf32>
    %5 = tpu.matmul %0, %4, %cst_5 {dimension_numbers = #tpu.dot_dimension_numbers<[1], [0], [0], [1], [0, 0, 1, 1], [], []>} : vector<1x8xf32>, vector<8x128xf32>, vector<1x128xf32> -> vector<1x128xf32>
    %6 = arith.mulf %4, %4 : vector<8x128xf32>
    %cst_6 = arith.constant dense<0.000000e+00> : vector<1x128xf32>
    %7 = tpu.matmul %0, %6, %cst_6 {dimension_numbers = #tpu.dot_dimension_numbers<[1], [0], [0], [1], [0, 0, 1, 1], [], []>} : vector<1x8xf32>, vector<8x128xf32>, vector<1x128xf32> -> vector<1x128xf32>
    %cst_7 = arith.constant 1.250000e-01 : f32
    %8 = vector.broadcast %cst_7 : f32 to vector<1x128xf32>
    %9 = arith.mulf %5, %8 : vector<1x128xf32>
    %cst_8 = arith.constant 1.250000e-01 : f32
    %10 = vector.broadcast %cst_8 : f32 to vector<1x128xf32>
    %11 = arith.mulf %7, %10 : vector<1x128xf32>
    %12 = arith.mulf %9, %9 : vector<1x128xf32>
    %13 = arith.subf %11, %12 : vector<1x128xf32>
    %cst_9 = arith.constant 0.000000e+00 : f32
    %14 = vector.broadcast %cst_9 : f32 to vector<1x128xf32>
    %15 = arith.maximumf %13, %14 : vector<1x128xf32>
    %c0_10 = arith.constant 0 : index
    %c0_11 = arith.constant 0 : index
    %c0_12 = arith.constant 0 : index
    %c0_13 = arith.constant 0 : index
    %16 = vector.load %arg2[%c0_10, %c0_11, %c0_12, %c0_13] : memref<2x3x1x128xf32, #tpu.memory_space<vmem>>, vector<1x1x1x128xf32>
    %17 = vector.shape_cast %16 : vector<1x1x1x128xf32> to vector<1x128xf32>
    %cst_14 = arith.constant 9.99999974E-6 : f32
    %18 = vector.broadcast %cst_14 : f32 to vector<1x128xf32>
    %19 = arith.addf %15, %18 : vector<1x128xf32>
    %20 = math.rsqrt %19 : vector<1x128xf32>
    %21 = arith.mulf %17, %20 : vector<1x128xf32>
    %c1 = arith.constant 1 : index
    %c0_15 = arith.constant 0 : index
    %c0_16 = arith.constant 0 : index
    %c0_17 = arith.constant 0 : index
    %22 = vector.load %arg2[%c1, %c0_15, %c0_16, %c0_17] : memref<2x3x1x128xf32, #tpu.memory_space<vmem>>, vector<1x1x1x128xf32>
    %23 = vector.shape_cast %22 : vector<1x1x1x128xf32> to vector<1x128xf32>
    %24 = arith.mulf %9, %21 : vector<1x128xf32>
    %25 = arith.subf %23, %24 : vector<1x128xf32>
    %26 = vector.broadcast %21 : vector<1x128xf32> to vector<8x128xf32>
    %27 = arith.mulf %4, %26 : vector<8x128xf32>
    %28 = vector.broadcast %25 : vector<1x128xf32> to vector<8x128xf32>
    %29 = arith.addf %27, %28 : vector<8x128xf32>
    %cst_18 = arith.constant 0.000000e+00 : f32
    %30 = vector.broadcast %cst_18 : f32 to vector<8x128xf32>
    %31 = arith.maximumf %29, %30 : vector<8x128xf32>
    %32 = arith.truncf %31 : vector<8x128xf32> to vector<8x128xbf16>
    %c1_19 = arith.constant 1 : index
    %c0_20 = arith.constant 0 : index
    %c0_21 = arith.constant 0 : index
    %33 = vector.load %arg1[%c1_19, %c0_20, %c0_21] : memref<3x128x128xbf16, #tpu.memory_space<vmem>>, vector<1x128x128xbf16>
    %34 = vector.shape_cast %33 : vector<1x128x128xbf16> to vector<128x128xbf16>
    %cst_22 = arith.constant dense<0.000000e+00> : vector<8x128xf32>
    %35 = tpu.matmul %32, %34, %cst_22 {dimension_numbers = #tpu.dot_dimension_numbers<[1], [0], [0], [1], [0, 0, 1, 1], [], []>} : vector<8x128xbf16>, vector<128x128xbf16>, vector<8x128xf32> -> vector<8x128xf32>
    %cst_23 = arith.constant dense<0.000000e+00> : vector<1x128xf32>
    %36 = tpu.matmul %0, %35, %cst_23 {dimension_numbers = #tpu.dot_dimension_numbers<[1], [0], [0], [1], [0, 0, 1, 1], [], []>} : vector<1x8xf32>, vector<8x128xf32>, vector<1x128xf32> -> vector<1x128xf32>
    %37 = arith.mulf %35, %35 : vector<8x128xf32>
    %cst_24 = arith.constant dense<0.000000e+00> : vector<1x128xf32>
    %38 = tpu.matmul %0, %37, %cst_24 {dimension_numbers = #tpu.dot_dimension_numbers<[1], [0], [0], [1], [0, 0, 1, 1], [], []>} : vector<1x8xf32>, vector<8x128xf32>, vector<1x128xf32> -> vector<1x128xf32>
    %cst_25 = arith.constant 1.250000e-01 : f32
    %39 = vector.broadcast %cst_25 : f32 to vector<1x128xf32>
    %40 = arith.mulf %36, %39 : vector<1x128xf32>
    %cst_26 = arith.constant 1.250000e-01 : f32
    %41 = vector.broadcast %cst_26 : f32 to vector<1x128xf32>
    %42 = arith.mulf %38, %41 : vector<1x128xf32>
    %43 = arith.mulf %40, %40 : vector<1x128xf32>
    %44 = arith.subf %42, %43 : vector<1x128xf32>
    %cst_27 = arith.constant 0.000000e+00 : f32
    %45 = vector.broadcast %cst_27 : f32 to vector<1x128xf32>
    %46 = arith.maximumf %44, %45 : vector<1x128xf32>
    %c0_28 = arith.constant 0 : index
    %c1_29 = arith.constant 1 : index
    %c0_30 = arith.constant 0 : index
    %c0_31 = arith.constant 0 : index
    %47 = vector.load %arg2[%c0_28, %c1_29, %c0_30, %c0_31] : memref<2x3x1x128xf32, #tpu.memory_space<vmem>>, vector<1x1x1x128xf32>
    %48 = vector.shape_cast %47 : vector<1x1x1x128xf32> to vector<1x128xf32>
    %cst_32 = arith.constant 9.99999974E-6 : f32
    %49 = vector.broadcast %cst_32 : f32 to vector<1x128xf32>
    %50 = arith.addf %46, %49 : vector<1x128xf32>
    %51 = math.rsqrt %50 : vector<1x128xf32>
    %52 = arith.mulf %48, %51 : vector<1x128xf32>
    %c1_33 = arith.constant 1 : index
    %c1_34 = arith.constant 1 : index
    %c0_35 = arith.constant 0 : index
    %c0_36 = arith.constant 0 : index
    %53 = vector.load %arg2[%c1_33, %c1_34, %c0_35, %c0_36] : memref<2x3x1x128xf32, #tpu.memory_space<vmem>>, vector<1x1x1x128xf32>
    %54 = vector.shape_cast %53 : vector<1x1x1x128xf32> to vector<1x128xf32>
    %55 = arith.mulf %40, %52 : vector<1x128xf32>
    %56 = arith.subf %54, %55 : vector<1x128xf32>
    %57 = vector.broadcast %52 : vector<1x128xf32> to vector<8x128xf32>
    %58 = arith.mulf %35, %57 : vector<8x128xf32>
    %59 = vector.broadcast %56 : vector<1x128xf32> to vector<8x128xf32>
    %60 = arith.addf %58, %59 : vector<8x128xf32>
    %cst_37 = arith.constant 0.000000e+00 : f32
    %61 = vector.broadcast %cst_37 : f32 to vector<8x128xf32>
    %62 = arith.maximumf %60, %61 : vector<8x128xf32>
    %63 = arith.truncf %62 : vector<8x128xf32> to vector<8x128xbf16>
    %c2 = arith.constant 2 : index
    %c0_38 = arith.constant 0 : index
    %c0_39 = arith.constant 0 : index
    %64 = vector.load %arg1[%c2, %c0_38, %c0_39] : memref<3x128x128xbf16, #tpu.memory_space<vmem>>, vector<1x128x128xbf16>
    %65 = vector.shape_cast %64 : vector<1x128x128xbf16> to vector<128x128xbf16>
    %cst_40 = arith.constant dense<0.000000e+00> : vector<8x128xf32>
    %66 = tpu.matmul %63, %65, %cst_40 {dimension_numbers = #tpu.dot_dimension_numbers<[1], [0], [0], [1], [0, 0, 1, 1], [], []>} : vector<8x128xbf16>, vector<128x128xbf16>, vector<8x128xf32> -> vector<8x128xf32>
    %cst_41 = arith.constant dense<0.000000e+00> : vector<1x128xf32>
    %67 = tpu.matmul %0, %66, %cst_41 {dimension_numbers = #tpu.dot_dimension_numbers<[1], [0], [0], [1], [0, 0, 1, 1], [], []>} : vector<1x8xf32>, vector<8x128xf32>, vector<1x128xf32> -> vector<1x128xf32>
    %68 = arith.mulf %66, %66 : vector<8x128xf32>
    %cst_42 = arith.constant dense<0.000000e+00> : vector<1x128xf32>
    %69 = tpu.matmul %0, %68, %cst_42 {dimension_numbers = #tpu.dot_dimension_numbers<[1], [0], [0], [1], [0, 0, 1, 1], [], []>} : vector<1x8xf32>, vector<8x128xf32>, vector<1x128xf32> -> vector<1x128xf32>
    %cst_43 = arith.constant 1.250000e-01 : f32
    %70 = vector.broadcast %cst_43 : f32 to vector<1x128xf32>
    %71 = arith.mulf %67, %70 : vector<1x128xf32>
    %cst_44 = arith.constant 1.250000e-01 : f32
    %72 = vector.broadcast %cst_44 : f32 to vector<1x128xf32>
    %73 = arith.mulf %69, %72 : vector<1x128xf32>
    %74 = arith.mulf %71, %71 : vector<1x128xf32>
    %75 = arith.subf %73, %74 : vector<1x128xf32>
    %cst_45 = arith.constant 0.000000e+00 : f32
    %76 = vector.broadcast %cst_45 : f32 to vector<1x128xf32>
    %77 = arith.maximumf %75, %76 : vector<1x128xf32>
    %c0_46 = arith.constant 0 : index
    %c2_47 = arith.constant 2 : index
    %c0_48 = arith.constant 0 : index
    %c0_49 = arith.constant 0 : index
    %78 = vector.load %arg2[%c0_46, %c2_47, %c0_48, %c0_49] : memref<2x3x1x128xf32, #tpu.memory_space<vmem>>, vector<1x1x1x128xf32>
    %79 = vector.shape_cast %78 : vector<1x1x1x128xf32> to vector<1x128xf32>
    %cst_50 = arith.constant 9.99999974E-6 : f32
    %80 = vector.broadcast %cst_50 : f32 to vector<1x128xf32>
    %81 = arith.addf %77, %80 : vector<1x128xf32>
    %82 = math.rsqrt %81 : vector<1x128xf32>
    %83 = arith.mulf %79, %82 : vector<1x128xf32>
    %c1_51 = arith.constant 1 : index
    %c2_52 = arith.constant 2 : index
    %c0_53 = arith.constant 0 : index
    %c0_54 = arith.constant 0 : index
    %84 = vector.load %arg2[%c1_51, %c2_52, %c0_53, %c0_54] : memref<2x3x1x128xf32, #tpu.memory_space<vmem>>, vector<1x1x1x128xf32>
    %85 = vector.shape_cast %84 : vector<1x1x1x128xf32> to vector<1x128xf32>
    %86 = arith.mulf %71, %83 : vector<1x128xf32>
    %87 = arith.subf %85, %86 : vector<1x128xf32>
    %88 = vector.broadcast %83 : vector<1x128xf32> to vector<8x128xf32>
    %89 = arith.mulf %66, %88 : vector<8x128xf32>
    %90 = vector.broadcast %87 : vector<1x128xf32> to vector<8x128xf32>
    %91 = arith.addf %89, %90 : vector<8x128xf32>
    %cst_55 = arith.constant 0.000000e+00 : f32
    %92 = vector.broadcast %cst_55 : f32 to vector<8x128xf32>
    %93 = arith.maximumf %91, %92 : vector<8x128xf32>
    %94 = arith.truncf %93 : vector<8x128xf32> to vector<8x128xbf16>
    %c0_56 = arith.constant 0 : index
    %c0_57 = arith.constant 0 : index
    %95 = vector.load %arg3[%c0_56, %c0_57] : memref<8x128xbf16, #tpu.memory_space<vmem>>, vector<8x128xbf16>
    tpu.vector_store %arg3[%c0_56, %c0_57], %94 {strides = array<i32>} : memref<8x128xbf16, #tpu.memory_space<vmem>>, vector<8x128xbf16>,
    return
  }
}

</mosaic_0001>

<llo_original>
// kernel: tpu_custom_call.1
$region0: #{tpu_custom_call.1}
  #allocation0 [shape = 'u32[]', space=smem, size = 0x4, offset = 0x4, fixed_abs, tag = 'smem constant byte address 0x4 - core index']
  #allocation1 [shape = 'u32[72,128]{1,0:T(1,128)}', space=vmem, size = 0x9000, scoped, tag = 'internal scratch']
  %s0 = inlined_call_operand.hbm [shape: bf16[8,128], index: 0, kind: input, shape index: {}]
  %s1 = inlined_call_operand.hbm [shape: bf16[3,128,128], index: 1, kind: input, shape index: {}]
  %s2 = inlined_call_operand.hbm [shape: f32[2,3,1,128], index: 2, kind: input, shape index: {}]
  %s3 = inlined_call_operand.hbm [shape: bf16[8,128], index: 3, kind: output, shape index: {}]
  %s4 = sld [smem:[#allocation0]]
  $region34: #{tpu_custom_call.1} parent=0
    _
  %s6 = ssub.s32 1, %s4
  %s7 = scalar_select 0, %s6, %s4
  $region1: #{tpu_custom_call.1} parent=0
    #allocation2 [shape = 'u8[2048]{0}', space=vmem, size = 0x800, scoped, tag = 'input window, operand 0, single buffered']
    #allocation3 [shape = 's32[1]{0}', space=sflag, size = 0x4, scoped, tag = 'scoped memory for tpu_custom_call.1']
    #allocation4 [shape = 's32[1]{0}', space=sflag, size = 0x4, scoped, tag = 'scoped memory for tpu_custom_call.1']
    #allocation5 [shape = 'u8[98304]{0}', space=vmem, size = 0x18000, scoped, tag = 'input window, operand 1, single buffered']
    #allocation6 [shape = 's32[1]{0}', space=sflag, size = 0x4, scoped, tag = 'scoped memory for tpu_custom_call.1']
    #allocation7 [shape = 'u8[3072]{0}', space=vmem, size = 0xc00, scoped, tag = 'input window, operand 2, single buffered']
    #allocation8 [shape = 'u8[2048]{0}', space=vmem, size = 0x800, scoped, tag = 'output window, operand 0, single buffered']
    %8 = vsyncpa [#allocation3], 0
    %9 = vsyncpa [#allocation6], 0
    %10 = vsyncpa [#allocation4], 0
    // Predicated region
    $region2: #{tpu_custom_call.1} parent=1 // pred_check
      _
    $region3: #{tpu_custom_call.1} parent=1 // pred_check_branch
      %12 = sbr.rel (0) target = $region5
    $region4: #{tpu_custom_call.1} parent=1 // pred_region
      %14 = vsyncadd [#allocation3], 0
      %s16 = sshll.u32 %s0, 4
      %s17 = int_to_ptr.hbm [resolvable:$true] %s16
      %s18 = sshll.u32 [#allocation2], 4
      %s19 = int_to_ptr.vmem [resolvable:$true] %s18
      %21 = dma.hbm_to_vmem [thread:$0]  %s17, 64, %s19, [#allocation3]
    $region5: #{tpu_custom_call.1} parent=1 // pred_fallthru
      _
    // Predicated region
    $region6: #{tpu_custom_call.1} parent=1 // pred_check
      _
    $region7: #{tpu_custom_call.1} parent=1 // pred_check_branch
      %23 = sbr.rel (0) target = $region9
    $region8: #{tpu_custom_call.1} parent=1 // pred_region
      %25 = vsyncadd [#allocation6], 0
      %s26 = sshll.u32 %s1, 4
      %s27 = int_to_ptr.hbm [resolvable:$true] %s26
      %s28 = sshll.u32 [#allocation5], 4
      %s29 = int_to_ptr.vmem [resolvable:$true] %s28
      %34 = dma.hbm_to_vmem [thread:$0]  %s27, 3072, %s29, [#allocation6], 64, 64, 4
    $region9: #{tpu_custom_call.1} parent=1 // pred_fallthru
      _
    // Predicated region
    $region10: #{tpu_custom_call.1} parent=1 // pred_check
      _
    $region11: #{tpu_custom_call.1} parent=1 // pred_check_branch
      %36 = sbr.rel (0) target = $region13
    $region12: #{tpu_custom_call.1} parent=1 // pred_region
      %38 = vsyncadd [#allocation6], 0
      %s39 = sshll.u32 %s2, 4
      %s40 = int_to_ptr.hbm [resolvable:$true] %s39
      %s41 = sshll.u32 [#allocation7], 4
      %s42 = int_to_ptr.vmem [resolvable:$true] %s41
      %47 = dma.hbm_to_vmem [thread:$0]  %s40, 96, %s42, [#allocation6], 16, 16, 1
    $region13: #{tpu_custom_call.1} parent=1 // pred_fallthru
      _
    // Predicated region
    $region14: #{tpu_custom_call.1} parent=1 // pred_check
      _
    $region15: #{tpu_custom_call.1} parent=1 // pred_check_branch
      %49 = sbr.rel (0) target = $region17
    $region16: #{tpu_custom_call.1} parent=1 // pred_region
      %51 = dma.done [#allocation3], 64
    $region17: #{tpu_custom_call.1} parent=1 // pred_fallthru
      _
    // Predicated region
    $region18: #{tpu_custom_call.1} parent=1 // pred_check
      _
    $region19: #{tpu_custom_call.1} parent=1 // pred_check_branch
      %53 = sbr.rel (0) target = $region21
    $region20: #{tpu_custom_call.1} parent=1 // pred_region
      %55 = dma.done [#allocation6], 3072
    $region21: #{tpu_custom_call.1} parent=1 // pred_fallthru
      _
    // Predicated region
    $region22: #{tpu_custom_call.1} parent=1 // pred_check
      _
    $region23: #{tpu_custom_call.1} parent=1 // pred_check_branch
      %57 = sbr.rel (0) target = $region25
    $region24: #{tpu_custom_call.1} parent=1 // pred_region
      %59 = dma.done [#allocation6], 96
    $region25: #{tpu_custom_call.1} parent=1 // pred_fallthru
      _
    %v60 = vld [vmem:[#allocation2] sm:$0xf]
    %v61 = vld [vmem:[#allocation5] sm:$0xf]
    %v62 = vld [vmem:[#allocation5 + $0x4] sm:$0xf]
    %v63 = vld [vmem:[#allocation5 + $0x8] sm:$0xf]
    %v64 = vld [vmem:[#allocation5 + $0xc] sm:$0xf]
    %v65 = vld [vmem:[#allocation5 + $0x10] sm:$0xf]
    %v66 = vld [vmem:[#allocation5 + $0x14] sm:$0xf]
    %v67 = vld [vmem:[#allocation5 + $0x18] sm:$0xf]
    %v68 = vld [vmem:[#allocation5 + $0x1c] sm:$0xf]
    %v69 = vld [vmem:[#allocation5 + $0x20] sm:$0xf]
    %v70 = vld [vmem:[#allocation5 + $0x24] sm:$0xf]
    %v71 = vld [vmem:[#allocation5 + $0x28] sm:$0xf]
    %v72 = vld [vmem:[#allocation5 + $0x2c] sm:$0xf]
    %v73 = vld [vmem:[#allocation5 + $0x30] sm:$0xf]
    %v74 = vld [vmem:[#allocation5 + $0x34] sm:$0xf]
    %v75 = vld [vmem:[#allocation5 + $0x38] sm:$0xf]
    %v76 = vld [vmem:[#allocation5 + $0x3c] sm:$0xf]
    %v93 = vunpack.c.l.b16 %v61
    %v94 = vunpack.c.l.b16 %v62
    %v95 = vunpack.c.l.b16 %v63
    %v96 = vunpack.c.l.b16 %v64
    %v97 = vunpack.c.l.b16 %v65
    %v98 = vunpack.c.l.b16 %v66
    %v99 = vunpack.c.l.b16 %v67
    %v100 = vunpack.c.l.b16 %v68
    %v101 = vunpack.c.l.b16 %v69
    %v102 = vunpack.c.l.b16 %v70
    %v103 = vunpack.c.l.b16 %v71
    %v104 = vunpack.c.l.b16 %v72
    %v105 = vunpack.c.l.b16 %v73
    %v106 = vunpack.c.l.b16 %v74
    %v107 = vunpack.c.l.b16 %v75
    %v108 = vunpack.c.l.b16 %v76
    %v109 = vpack.c.b16 %v94, %v93
    %v110 = vpack.c.b16 %v96, %v95
    %v111 = vpack.c.b16 %v98, %v97
    %v112 = vpack.c.b16 %v100, %v99
    %v113 = vpack.c.b16 %v102, %v101
    %v114 = vpack.c.b16 %v104, %v103
    %v115 = vpack.c.b16 %v106, %v105
    %v116 = vpack.c.b16 %v108, %v107
    %125 = vmatpush.bf16.msra.mxu0 %v116
    %126 = vmatpush.bf16.msra.mxu0 %v115
    %127 = vmatpush.bf16.msra.mxu0 %v114
    %128 = vmatpush.bf16.msra.mxu0 %v113
    %129 = vmatpush.bf16.msra.mxu0 %v112
    %130 = vmatpush.bf16.msra.mxu0 %v111
    %131 = vmatpush.bf16.msra.mxu0 %v110
    %132 = vmatpush.bf16.msra.mxu0 %v109
    %133 = vmatmul.bf16.gmra.mxu0 %v60
    %v134 = vpop.f32.mrf.mxu0
    %v135 = vadd.f32 0.0, %v134
    %v136 = vpop.f32.mrf.mxu0
    %137 = vdwg.mxu0
    %vm138 = vcmask 64512
    %v140 = vsel %vm138, 1.0, 0
    %142 = vmatpush.msra.mxu0 0.0
    %143 = vmatpush.msra.mxu0 0.0
    %144 = vmatpush.msra.mxu0 0.0
    %145 = vmatpush.msra.mxu0 0.0
    %146 = vmatpush.msra.mxu0 0.0
    %147 = vmatpush.msra.mxu0 0.0
    %148 = vmatpush.msra.mxu0 0.0
    %149 = vmatpush.msra.mxu0 0.0
    %150 = vmatpush.msra.mxu0 0.0
    %151 = vmatpush.msra.mxu0 0.0
    %152 = vmatpush.msra.mxu0 0.0
    %153 = vmatpush.msra.mxu0 0.0
    %154 = vmatpush.msra.mxu0 0.0
    %155 = vmatpush.msra.mxu0 0.0
    %156 = vmatpush.msra.mxu0 0.0
    %157 = vmatpush.msra.mxu0 %v135
    %158 = vmatmul.f32.gmra.mxu0 %v140
    %v159 = vpop.f32.mrf.mxu0
    %v160 = vadd.f32 0.0, %v159
    %161 = vdwg.mxu0
    %v162 = vmul.f32 %v135, %v135
    %163 = vmatpush.msra.mxu0 0.0
    %164 = vmatpush.msra.mxu0 0.0
    %165 = vmatpush.msra.mxu0 0.0
    %166 = vmatpush.msra.mxu0 0.0
    %167 = vmatpush.msra.mxu0 0.0
    %168 = vmatpush.msra.mxu0 0.0
    %169 = vmatpush.msra.mxu0 0.0
    %170 = vmatpush.msra.mxu0 0.0
    %171 = vmatpush.msra.mxu0 0.0
    %172 = vmatpush.msra.mxu0 0.0
    %173 = vmatpush.msra.mxu0 0.0
    %174 = vmatpush.msra.mxu0 0.0
    %175 = vmatpush.msra.mxu0 0.0
    %176 = vmatpush.msra.mxu0 0.0
    %177 = vmatpush.msra.mxu0 0.0
    %178 = vmatpush.msra.mxu0 %v162
    %179 = vmatmul.f32.gmra.mxu0 %v140
    %v180 = vpop.f32.mrf.mxu0
    %v181 = vadd.f32 0.0, %v180
    %182 = vdwg.mxu0
    %v183 = vmul.f32 %v160, 0.125
    %v184 = vmul.f32 %v181, 0.125
    %v185 = vmul.f32 %v183, %v183
    %v186 = vsub.f32 %v184, %v185
    %v187 = vmax.f32 %v186, 0.0
    %v188 = vld [vmem:[#allocation7] sm:$0x1]
    %v189 = vadd.f32 %v187, 1e-05
    %v190 = vrsqrt.pop %v189
    %v191 = vmul.f32 %v190, %v189
    %v192 = vmul.f32 %v191, %v190
    %v193 = vmul.f32 0.5, %v192
    %v194 = vsub.f32 1.5, %v193
    %v195 = vmul.f32 %v190, %v194
    %vm196 = vweird.f32 %v189
    %vm197 = vweird.f32 %v190
    %vm198 = vmor %vm196, %vm197
    %v199 = vsel %vm198, %v190, %v195
    %v200 = vmul.f32 %v188, %v199
    %s201 = scalar_lea.vmem [#allocation7], 3
    %v202 = vld [vmem:[%s201] sm:$0x1]
    %v203 = vmul.f32 %v183, %v200
    %v204 = vsub.f32 %v202, %v203
    %v206 = vperm.slane %v200, 0
    %v208 = vmul.f32 %v135, %v206
    %v210 = vperm.slane %v204, 0
    %v212 = vadd.f32 %v208, %v210
    %v213 = vmax.f32 %v212, 0.0
    %v214 = vpack.c.bf16 %v213, %v213
    %s215 = scalar_lea.vmem [#allocation5], 64
    %v216 = vld [vmem:[%s215] sm:$0xf]
    %v217 = vld [vmem:[%s215 + $0x4] sm:$0xf]
    %v218 = vld [vmem:[%s215 + $0x8] sm:$0xf]
    %v219 = vld [vmem:[%s215 + $0xc] sm:$0xf]
    %v220 = vld [vmem:[%s215 + $0x10] sm:$0xf]
    %v221 = vld [vmem:[%s215 + $0x14] sm:$0xf]
    %v222 = vld [vmem:[%s215 + $0x18] sm:$0xf]
    %v223 = vld [vmem:[%s215 + $0x1c] sm:$0xf]
    %v224 = vld [vmem:[%s215 + $0x20] sm:$0xf]
    %v225 = vld [vmem:[%s215 + $0x24] sm:$0xf]
    %v226 = vld [vmem:[%s215 + $0x28] sm:$0xf]
    %v227 = vld [vmem:[%s215 + $0x2c] sm:$0xf]
    %v228 = vld [vmem:[%s215 + $0x30] sm:$0xf]
    %v229 = vld [vmem:[%s215 + $0x34] sm:$0xf]
    %v230 = vld [vmem:[%s215 + $0x38] sm:$0xf]
    %v231 = vld [vmem:[%s215 + $0x3c] sm:$0xf]
    %v248 = vunpack.c.l.b16 %v216
    %v249 = vunpack.c.l.b16 %v217
    %v250 = vunpack.c.l.b16 %v218
    %v251 = vunpack.c.l.b16 %v219
    %v252 = vunpack.c.l.b16 %v220
    %v253 = vunpack.c.l.b16 %v221
    %v254 = vunpack.c.l.b16 %v222
    %v255 = vunpack.c.l.b16 %v223
    %v256 = vunpack.c.l.b16 %v224
    %v257 = vunpack.c.l.b16 %v225
    %v258 = vunpack.c.l.b16 %v226
    %v259 = vunpack.c.l.b16 %v227
    %v260 = vunpack.c.l.b16 %v228
    %v261 = vunpack.c.l.b16 %v229
    %v262 = vunpack.c.l.b16 %v230
    %v263 = vunpack.c.l.b16 %v231
    %v264 = vpack.c.b16 %v249, %v248
    %v265 = vpack.c.b16 %v251, %v250
    %v266 = vpack.c.b16 %v253, %v252
    %v267 = vpack.c.b16 %v255, %v254
    %v268 = vpack.c.b16 %v257, %v256
    %v269 = vpack.c.b16 %v259, %v258
    %v270 = vpack.c.b16 %v261, %v260
    %v271 = vpack.c.b16 %v263, %v262
    %280 = vmatpush.bf16.msra.mxu0 %v271
    %281 = vmatpush.bf16.msra.mxu0 %v270
    %282 = vmatpush.bf16.msra.mxu0 %v269
    %283 = vmatpush.bf16.msra.mxu0 %v268
    %284 = vmatpush.bf16.msra.mxu0 %v267
    %285 = vmatpush.bf16.msra.mxu0 %v266
    %286 = vmatpush.bf16.msra.mxu0 %v265
    %287 = vmatpush.bf16.msra.mxu0 %v264
    %288 = vmatmul.bf16.gmra.mxu0 %v214
    %v289 = vpop.f32.mrf.mxu0
    %v290 = vadd.f32 0.0, %v289
    %v291 = vpop.f32.mrf.mxu0
    %292 = vdwg.mxu0
    %293 = vmatpush.msra.mxu0 0.0
    %294 = vmatpush.msra.mxu0 0.0
    %295 = vmatpush.msra.mxu0 0.0
    %296 = vmatpush.msra.mxu0 0.0
    %297 = vmatpush.msra.mxu0 0.0
    %298 = vmatpush.msra.mxu0 0.0
    %299 = vmatpush.msra.mxu0 0.0
    %300 = vmatpush.msra.mxu0 0.0
    %301 = vmatpush.msra.mxu0 0.0
    %302 = vmatpush.msra.mxu0 0.0
    %303 = vmatpush.msra.mxu0 0.0
    %304 = vmatpush.msra.mxu0 0.0
    %305 = vmatpush.msra.mxu0 0.0
    %306 = vmatpush.msra.mxu0 0.0
    %307 = vmatpush.msra.mxu0 0.0
    %308 = vmatpush.msra.mxu0 %v290
    %309 = vmatmul.f32.gmra.mxu0 %v140
    %v310 = vpop.f32.mrf.mxu0
    %v311 = vadd.f32 0.0, %v310
    %312 = vdwg.mxu0
    %v313 = vmul.f32 %v290, %v290
    %314 = vmatpush.msra.mxu0 0.0
    %315 = vmatpush.msra.mxu0 0.0
    %316 = vmatpush.msra.mxu0 0.0
    %317 = vmatpush.msra.mxu0 0.0
    %318 = vmatpush.msra.mxu0 0.0
    %319 = vmatpush.msra.mxu0 0.0
    %320 = vmatpush.msra.mxu0 0.0
    %321 = vmatpush.msra.mxu0 0.0
    %322 = vmatpush.msra.mxu0 0.0
    %323 = vmatpush.msra.mxu0 0.0
    %324 = vmatpush.msra.mxu0 0.0
    %325 = vmatpush.msra.mxu0 0.0
    %326 = vmatpush.msra.mxu0 0.0
    %327 = vmatpush.msra.mxu0 0.0
    %328 = vmatpush.msra.mxu0 0.0
    %329 = vmatpush.msra.mxu0 %v313
    %330 = vmatmul.f32.gmra.mxu0 %v140
    %v331 = vpop.f32.mrf.mxu0
    %v332 = vadd.f32 0.0, %v331
    %333 = vdwg.mxu0
    %v334 = vmul.f32 %v311, 0.125
    %v335 = vmul.f32 %v332, 0.125
    %v336 = vmul.f32 %v334, %v334
    %v337 = vsub.f32 %v335, %v336
    %v338 = vmax.f32 %v337, 0.0
    %s339 = scalar_lea.vmem [#allocation7], 1
    %v340 = vld [vmem:[%s339] sm:$0x1]
    %v341 = vadd.f32 %v338, 1e-05
    %v342 = vrsqrt.pop %v341
    %v343 = vmul.f32 %v342, %v341
    %v344 = vmul.f32 %v343, %v342
    %v345 = vmul.f32 0.5, %v344
    %v346 = vsub.f32 1.5, %v345
    %v347 = vmul.f32 %v342, %v346
    %vm348 = vweird.f32 %v341
    %vm349 = vweird.f32 %v342
    %vm350 = vmor %vm348, %vm349
    %v351 = vsel %vm350, %v342, %v347
    %v352 = vmul.f32 %v340, %v351
    %s353 = scalar_lea.vmem [#allocation7], 4
    %v354 = vld [vmem:[%s353] sm:$0x1]
    %v355 = vmul.f32 %v334, %v352
    %v356 = vsub.f32 %v354, %v355
    %v358 = vperm.slane %v352, 0
    %v360 = vmul.f32 %v290, %v358
    %v362 = vperm.slane %v356, 0
    %v364 = vadd.f32 %v360, %v362
    %v365 = vmax.f32 %v364, 0.0
    %v366 = vpack.c.bf16 %v365, %v365
    %s367 = scalar_lea.vmem [#allocation5], 128
    %v368 = vld [vmem:[%s367] sm:$0xf]
    %v369 = vld [vmem:[%s367 + $0x4] sm:$0xf]
    %v370 = vld [vmem:[%s367 + $0x8] sm:$0xf]
    %v371 = vld [vmem:[%s367 + $0xc] sm:$0xf]
    %v372 = vld [vmem:[%s367 + $0x10] sm:$0xf]
    %v373 = vld [vmem:[%s367 + $0x14] sm:$0xf]
    %v374 = vld [vmem:[%s367 + $0x18] sm:$0xf]
    %v375 = vld [vmem:[%s367 + $0x1c] sm:$0xf]
    %v376 = vld [vmem:[%s367 + $0x20] sm:$0xf]
    %v377 = vld [vmem:[%s367 + $0x24] sm:$0xf]
    %v378 = vld [vmem:[%s367 + $0x28] sm:$0xf]
    %v379 = vld [vmem:[%s367 + $0x2c] sm:$0xf]
    %v380 = vld [vmem:[%s367 + $0x30] sm:$0xf]
    %v381 = vld [vmem:[%s367 + $0x34] sm:$0xf]
    %v382 = vld [vmem:[%s367 + $0x38] sm:$0xf]
    %v383 = vld [vmem:[%s367 + $0x3c] sm:$0xf]
    %v400 = vunpack.c.l.b16 %v368
    %v401 = vunpack.c.l.b16 %v369
    %v402 = vunpack.c.l.b16 %v370
    %v403 = vunpack.c.l.b16 %v371
    %v404 = vunpack.c.l.b16 %v372
    %v405 = vunpack.c.l.b16 %v373
    %v406 = vunpack.c.l.b16 %v374
    %v407 = vunpack.c.l.b16 %v375
    %v408 = vunpack.c.l.b16 %v376
    %v409 = vunpack.c.l.b16 %v377
    %v410 = vunpack.c.l.b16 %v378
    %v411 = vunpack.c.l.b16 %v379
    %v412 = vunpack.c.l.b16 %v380
    %v413 = vunpack.c.l.b16 %v381
    %v414 = vunpack.c.l.b16 %v382
    %v415 = vunpack.c.l.b16 %v383
    %v416 = vpack.c.b16 %v401, %v400
    %v417 = vpack.c.b16 %v403, %v402
    %v418 = vpack.c.b16 %v405, %v404
    %v419 = vpack.c.b16 %v407, %v406
    %v420 = vpack.c.b16 %v409, %v408
    %v421 = vpack.c.b16 %v411, %v410
    %v422 = vpack.c.b16 %v413, %v412
    %v423 = vpack.c.b16 %v415, %v414
    %432 = vmatpush.bf16.msra.mxu0 %v423
    %433 = vmatpush.bf16.msra.mxu0 %v422
    %434 = vmatpush.bf16.msra.mxu0 %v421
    %435 = vmatpush.bf16.msra.mxu0 %v420
    %436 = vmatpush.bf16.msra.mxu0 %v419
    %437 = vmatpush.bf16.msra.mxu0 %v418
    %438 = vmatpush.bf16.msra.mxu0 %v417
    %439 = vmatpush.bf16.msra.mxu0 %v416
    %440 = vmatmul.bf16.gmra.mxu0 %v366
    %v441 = vpop.f32.mrf.mxu0
    %v442 = vadd.f32 0.0, %v441
    %v443 = vpop.f32.mrf.mxu0
    %444 = vdwg.mxu0
    %445 = vmatpush.msra.mxu0 0.0
    %446 = vmatpush.msra.mxu0 0.0
    %447 = vmatpush.msra.mxu0 0.0
    %448 = vmatpush.msra.mxu0 0.0
    %449 = vmatpush.msra.mxu0 0.0
    %450 = vmatpush.msra.mxu0 0.0
    %451 = vmatpush.msra.mxu0 0.0
    %452 = vmatpush.msra.mxu0 0.0
    %453 = vmatpush.msra.mxu0 0.0
    %454 = vmatpush.msra.mxu0 0.0
    %455 = vmatpush.msra.mxu0 0.0
    %456 = vmatpush.msra.mxu0 0.0
    %457 = vmatpush.msra.mxu0 0.0
    %458 = vmatpush.msra.mxu0 0.0
    %459 = vmatpush.msra.mxu0 0.0
    %460 = vmatpush.msra.mxu0 %v442
    %461 = vmatmul.f32.gmra.mxu0 %v140
    %v462 = vpop.f32.mrf.mxu0
    %v463 = vadd.f32 0.0, %v462
    %464 = vdwg.mxu0
    %v465 = vmul.f32 %v442, %v442
    %466 = vmatpush.msra.mxu0 0.0
    %467 = vmatpush.msra.mxu0 0.0
    %468 = vmatpush.msra.mxu0 0.0
    %469 = vmatpush.msra.mxu0 0.0
    %470 = vmatpush.msra.mxu0 0.0
    %471 = vmatpush.msra.mxu0 0.0
    %472 = vmatpush.msra.mxu0 0.0
    %473 = vmatpush.msra.mxu0 0.0
    %474 = vmatpush.msra.mxu0 0.0
    %475 = vmatpush.msra.mxu0 0.0
    %476 = vmatpush.msra.mxu0 0.0
    %477 = vmatpush.msra.mxu0 0.0
    %478 = vmatpush.msra.mxu0 0.0
    %479 = vmatpush.msra.mxu0 0.0
    %480 = vmatpush.msra.mxu0 0.0
    %481 = vmatpush.msra.mxu0 %v465
    %482 = vmatmul.f32.gmra.mxu0 %v140
    %v483 = vpop.f32.mrf.mxu0
    %v484 = vadd.f32 0.0, %v483
    %485 = vdwg.mxu0
    %v486 = vmul.f32 %v463, 0.125
    %v487 = vmul.f32 %v484, 0.125
    %v488 = vmul.f32 %v486, %v486
    %v489 = vsub.f32 %v487, %v488
    %v490 = vmax.f32 %v489, 0.0
    %s491 = scalar_lea.vmem [#allocation7], 2
    %v492 = vld [vmem:[%s491] sm:$0x1]
    %v493 = vadd.f32 %v490, 1e-05
    %v494 = vrsqrt.pop %v493
    %v495 = vmul.f32 %v494, %v493
    %v496 = vmul.f32 %v495, %v494
    %v497 = vmul.f32 0.5, %v496
    %v498 = vsub.f32 1.5, %v497
    %v499 = vmul.f32 %v494, %v498
    %vm500 = vweird.f32 %v493
    %vm501 = vweird.f32 %v494
    %vm502 = vmor %vm500, %vm501
    %v503 = vsel %vm502, %v494, %v499
    %v504 = vmul.f32 %v492, %v503
    %s505 = scalar_lea.vmem [#allocation7], 5
    %v506 = vld [vmem:[%s505] sm:$0x1]
    %v507 = vmul.f32 %v486, %v504
    %v508 = vsub.f32 %v506, %v507
    %v510 = vperm.slane %v504, 0
    %v512 = vmul.f32 %v442, %v510
    %v514 = vperm.slane %v508, 0
    %v516 = vadd.f32 %v512, %v514
    %v517 = vmax.f32 %v516, 0.0
    %v518 = vpack.c.bf16 %v517, %v517
    %519 = vst [vmem:[#allocation8] sm:$0xf] %v518
    // Predicated region
    $region26: #{tpu_custom_call.1} parent=1 // pred_check
      _
    $region27: #{tpu_custom_call.1} parent=1 // pred_check_branch
      %521 = sbr.rel (0) target = $region29
    $region28: #{tpu_custom_call.1} parent=1 // pred_region
      %523 = vsyncadd [#allocation4], 0
      %s525 = sshll.u32 [#allocation8], 4
      %s526 = int_to_ptr.vmem [resolvable:$true] %s525
      %s527 = sshll.u32 %s3, 4
      %s528 = int_to_ptr.hbm [resolvable:$true] %s527
      %530 = dma.vmem_to_hbm [thread:$0]  %s526, 64, %s528, [#allocation4]
    $region29: #{tpu_custom_call.1} parent=1 // pred_fallthru
      _
    // Predicated region
    $region30: #{tpu_custom_call.1} parent=1 // pred_check
      _
    $region31: #{tpu_custom_call.1} parent=1 // pred_check_branch
      %532 = sbr.rel (0) target = $region33
    $region32: #{tpu_custom_call.1} parent=1 // pred_region
      %534 = dma.done [#allocation4], 64
    $region33: #{tpu_custom_call.1} parent=1 // pred_fallthru
      _
    %535 = vsyncpa [#allocation3], 1
    %536 = vsyncpa [#allocation6], 1
    %537 = vsyncpa [#allocation4], 1

</llo_original>
